<compile_context>
chip_gen: v7x
topology: tpu7x:2x2x1
jax: 0.10.0
libtpu: 0.0.40
codegen_flags: <defaults>
</compile_context>

<pallas_src>
import functools

import jax
import jax.numpy as jnp
from jax.experimental import pallas as pl
from jax.experimental.pallas import tpu as pltpu

IGNORE_INDEX = -100
MAX_TILE_ROWS = 8192
VMEM_BUDGET_BYTES = 20 * 1024 * 1024   # accounted blocks + temporaries + scratch
VMEM_LIMIT_BYTES = 40 * 1024 * 1024    # explicit scoped-VMEM limit (ok on v5e/v6e/v7x)


def _round_up(x, m):
    return ((x + m - 1) // m) * m


@functools.lru_cache(maxsize=1)
def _num_tensorcores():
    """TensorCores per chip (2 on v7x, else 1); sizes the 'parallel' grid axis."""
    try:
        info = pltpu.get_tpu_info()
        for name in ("num_cores", "core_count", "num_tensorcores",
                     "tensorcores_per_chip", "cores_per_chip", "num_cores_per_chip"):
            v = getattr(info, name, None)
            if v:
                return max(1, int(v))
    except Exception:
        pass
    try:
        kind = jax.devices()[0].device_kind.lower()
        if "v7" in kind or "7x" in kind:
            return 2
    except Exception:
        pass
    return 1


def _choose_tile_rows(rows, num_classes, itemsize):
    """Largest row tile (multiple of 8) whose accounted VMEM footprint fits the budget.

    Per-row bytes:
      2 * C * itemsize   logits block, double-buffered
      2 * C * 4          f32 upcast + exp() tile-sized compiler temporaries
      2 * 512            (tile_r, 1) int32 target block x2 buffers (minor dim pads to 128 lanes)
      512                (tile_r, 1) f32 VMEM accumulator scratch (lane padded)
    """
    per_row = 2 * num_classes * itemsize + 2 * num_classes * 4 + 2 * 512 + 512
    t = VMEM_BUDGET_BYTES // per_row
    t = min(t, MAX_TILE_ROWS, _round_up(rows, 8))
    t = max(8, (t // 8) * 8)
    return int(t)


def _ce_sum_kernel(pre_ref, tgt_ref, out_ref, acc_ref):
    """Accumulate the masked per-row cross-entropy sum for one core-slice of rows."""
    i = pl.program_id(1)
    n_inner = pl.num_programs(1)

    @pl.when(i == 0)
    def _init():
        acc_ref[...] = jnp.zeros_like(acc_ref)

    pre = pre_ref[...].astype(jnp.float32)          # (TILE_R, C); upcast on the VMEM tile
    tgt = tgt_ref[...]                              # (TILE_R, 1) int32
    tile_r, num_classes = pre.shape

    # Max-shifted logsumexp (exp/log go to the EUP slot).
    m = jnp.max(pre, axis=-1, keepdims=True)                                  # (TILE_R, 1)
    sumexp = jnp.sum(jnp.exp(pre - m), axis=-1, keepdims=True)                # (TILE_R, 1)
    lse = jnp.log(sumexp) + m                                                 # (TILE_R, 1)

    # Target logit via compare-select reduction (no float one-hot temporaries).
    cls_iota = jax.lax.broadcasted_iota(jnp.int32, (tile_r, num_classes), 1)
    tgt_logit = jnp.sum(jnp.where(cls_iota == tgt, pre, jnp.float32(0.0)),
                        axis=-1, keepdims=True)                               # (TILE_R, 1)

    # ignore_index rows contribute 0.  Targets are padded with IGNORE_INDEX out to the
    # grid extent, so ragged / duplicated tail logits blocks (garbage data) are masked
    # here as well -- jnp.where does not propagate NaNs from the unselected branch.
    ce = jnp.where(tgt != IGNORE_INDEX, lse - tgt_logit, jnp.float32(0.0))    # (TILE_R, 1)

    # Per-row VMEM accumulator: no cross-lane reduce / scalar RMW in the hot loop.
    acc_ref[...] += ce

    @pl.when(i == n_inner - 1)
    def _finalize():
        out_ref[...] = jnp.full(out_ref.shape, jnp.sum(acc_ref[...]), dtype=jnp.float32)


@functools.partial(jax.jit, static_argnames=("beta",))
def vae_loss(pre, tgt, mu, log_var, beta=1.0):
    n, l, c = pre.shape
    rows = n * l
    itemsize = jnp.dtype(pre.dtype).itemsize

    pre2 = pre.reshape(rows, c)                      # native dtype; NOT padded (no HBM copy)
    tgt2 = tgt.reshape(rows, 1).astype(jnp.int32)

    tile_r = _choose_tile_rows(rows, c, itemsize)
    num_row_blocks = int(pl.cdiv(rows, tile_r))
    num_cores = _num_tensorcores()
    num_slices = num_cores if num_row_blocks >= num_cores else 1
    tiles_per_slice = int(pl.cdiv(num_row_blocks, num_slices))
    grid_rows = num_slices * tiles_per_slice * tile_r

    # Only the tiny int32 target column gets padded (grid_rows*4 B).  Pad value
    # IGNORE_INDEX masks every row past `rows` inside the kernel.
    if grid_rows != rows:
        tgt2 = jnp.pad(tgt2, ((0, grid_rows - rows), (0, 0)),
                       constant_values=IGNORE_INDEX)

    # Logits block index is clamped so a fully-out-of-range tail block (possible only
    # when num_slices > 1 and num_row_blocks is odd) re-reads the last real block; its
    # targets are IGNORE_INDEX so it contributes exactly 0.
    def _pre_map(s, i):
        return (jnp.minimum(s * tiles_per_slice + i, num_row_blocks - 1), 0)

    def _tgt_map(s, i):
        return (s * tiles_per_slice + i, 0)

    partials = pl.pallas_call(
        _ce_sum_kernel,
        out_shape=jax.ShapeDtypeStruct((num_slices, 8, 128), jnp.float32),
        grid_spec=pltpu.PrefetchScalarGridSpec(
            num_scalar_prefetch=0,
            grid=(num_slices, tiles_per_slice),
            in_specs=[
                pl.BlockSpec((tile_r, c), _pre_map),
                pl.BlockSpec((tile_r, 1), _tgt_map),
            ],
            out_specs=pl.BlockSpec((1, 8, 128), lambda s, i: (s, 0, 0)),
            scratch_shapes=[pltpu.VMEM((tile_r, 1), jnp.float32)],
        ),
        compiler_params=pltpu.CompilerParams(
            dimension_semantics=("parallel", "arbitrary"),
            vmem_limit_bytes=VMEM_LIMIT_BYTES,
        ),
        cost_estimate=pl.CostEstimate(
            flops=int(6 * rows * c),
            transcendentals=int(rows * (c + 1)),
            bytes_accessed=int(rows * c * itemsize + grid_rows * 4
                               + num_slices * 8 * 128 * 4),
        ),
    )(pre2, tgt2)

    # sample_weights=None / reduction='mean' path: sum over seq dim, mean over batch.
    r_loss = jnp.sum(partials[:, 0, 0]) / jnp.float32(n)

    # KL over the tiny (N, D) latent stats: plain JAX, kept out of the tiled pipeline.
    mu32 = mu.astype(jnp.float32)
    lv32 = log_var.astype(jnp.float32)
    kld_elem = -0.5 * (1.0 + lv32 - mu32 * mu32 - jnp.exp(lv32))
    kld = jnp.mean(jnp.sum(kld_elem, axis=1))

    loss = r_loss + beta * kld
    return loss, r_loss, kld


def _vae_loss_ref(pre, tgt, mu, log_var, beta=1.0):
    """Pure-JAX reference mirroring the PyTorch module (sample_weights=None, 'mean')."""
    logp = jax.nn.log_softmax(pre.astype(jnp.float32), axis=-1)
    safe_tgt = jnp.where(tgt == IGNORE_INDEX, 0, tgt)
    ce = -jnp.take_along_axis(logp, safe_tgt[..., None], axis=-1)[..., 0]
    ce = jnp.where(tgt == IGNORE_INDEX, 0.0, ce)
    r_loss = jnp.mean(jnp.sum(ce, axis=1))
    kld_elem = -0.5 * (1.0 + log_var.astype(jnp.float32)
                       - mu.astype(jnp.float32) ** 2
                       - jnp.exp(log_var.astype(jnp.float32)))
    kld = jnp.mean(jnp.sum(kld_elem, axis=1))
    return r_loss + beta * kld, r_loss, kld


if __name__ == "__main__":
    key = jax.random.PRNGKey(0)

    def _check(n, l, c, d, beta, dtype, atol, rtol, with_ignore):
        k1, k2, k3, k4 = jax.random.split(jax.random.fold_in(key, n * 1000 + l), 4)
        pre = jax.random.normal(k1, (n, l, c), dtype=jnp.float32).astype(dtype)
        tgt = jax.random.randint(k2, (n, l), 0, c, dtype=jnp.int32)
        if with_ignore:
            tgt = tgt.at[0, : max(1, l // 4)].set(IGNORE_INDEX)
        mu = (0.5 * jax.random.normal(k3, (n, d), dtype=jnp.float32)).astype(dtype)
        log_var = (0.3 * jax.random.normal(k4, (n, d), dtype=jnp.float32)).astype(dtype)

        out = vae_loss(pre, tgt, mu, log_var, beta=beta)
        jax.block_until_ready(out)
        ref = _vae_loss_ref(pre, tgt, mu, log_var, beta=beta)
        for got, want in zip(out, ref):
            assert jnp.allclose(got, want, rtol=rtol, atol=atol), (got, want)

    # Small shapes consistent with the module: N=batch, L=sequence, C=classes, D=latent.
    _check(2, 8, 32, 16, beta=1.0, dtype=jnp.float32, atol=1e-5, rtol=1e-5, with_ignore=True)
    # Non-divisible row count exercises the tail-masking path and beta != 1.
    _check(3, 37, 96, 16, beta=0.5, dtype=jnp.float32, atol=1e-4, rtol=1e-4, with_ignore=True)
    # Native-bf16 logits path (halves HBM traffic; upcast happens on the VMEM tile).
    _check(2, 16, 64, 16, beta=1.0, dtype=jnp.bfloat16, atol=5e-2, rtol=5e-2, with_ignore=False)
    # Multi-tile path: several row blocks per slice, ragged last block, accumulator carry,
    # and (on v7x) the 2-way parallel axis with a clamped duplicate tail block.
    _check(3, 3000, 256, 16, beta=1.0, dtype=jnp.float32, atol=1e-2, rtol=5e-4, with_ignore=True)

    print("KERNEL_OK")
</pallas_src>

<mosaic_0001>
module attributes {stable_mosaic.version = 11 : i64} {
  func.func @_ce_sum_kernel(%arg0: i32, %arg1: i32, %arg2: memref<16x32xf32, #tpu.memory_space<vmem>>, %arg3: memref<16x1xi32, #tpu.memory_space<vmem>>, %arg4: memref<1x8x128xf32, #tpu.memory_space<vmem>>, %arg5: memref<16x1xf32, #tpu.memory_space<vmem>>) attributes {dimension_semantics = [#tpu.dimension_semantics<parallel>, #tpu.dimension_semantics<arbitrary>], iteration_bounds = array<i64: 1, 1>, scalar_prefetch = 0 : i64, scratch_operands = 1 : i64, tpu.core_type = #tpu.core_type<tc>, window_params = [{transform_indices = @transform_0, window_bounds = array<i64: 16, 32>}, {transform_indices = @transform_1, window_bounds = array<i64: 16, 1>}, {transform_indices = @transform_2, window_bounds = array<i64: 1, 8, 128>}]} {
    %c0_i32 = arith.constant 0 : i32
    %0 = arith.cmpi eq, %arg1, %c0_i32 : i32
    %1 = arith.extui %0 : i1 to i32
    %c0_i32_0 = arith.constant 0 : i32
    %2 = arith.cmpi ne, %1, %c0_i32_0 : i32
    scf.if %2 {
      %cst_14 = arith.constant 0.000000e+00 : f32
      %32 = vector.broadcast %cst_14 : f32 to vector<16x1xf32>
      %c0_15 = arith.constant 0 : index
      %c0_16 = arith.constant 0 : index
      %33 = vector.load %arg5[%c0_15, %c0_16] : memref<16x1xf32, #tpu.memory_space<vmem>>, vector<16x1xf32>
      tpu.vector_store %arg5[%c0_15, %c0_16], %32 {strides = array<i32>} : memref<16x1xf32, #tpu.memory_space<vmem>>, vector<16x1xf32>,
    } else {
    }
    %c0 = arith.constant 0 : index
    %c0_1 = arith.constant 0 : index
    %3 = vector.load %arg2[%c0, %c0_1] : memref<16x32xf32, #tpu.memory_space<vmem>>, vector<16x32xf32>
    %c0_2 = arith.constant 0 : index
    %c0_3 = arith.constant 0 : index
    %4 = vector.load %arg3[%c0_2, %c0_3] : memref<16x1xi32, #tpu.memory_space<vmem>>, vector<16x1xi32>
    %cst = arith.constant dense<0xFF800000> : vector<16xf32>
    %5 = vector.multi_reduction <maximumf>, %3, %cst [1] : vector<16x32xf32> to vector<16xf32>
    %6 = vector.shape_cast %5 : vector<16xf32> to vector<16x1xf32>
    %7 = vector.broadcast %6 : vector<16x1xf32> to vector<16x32xf32>
    %8 = arith.subf %3, %7 : vector<16x32xf32>
    %9 = math.exp %8 : vector<16x32xf32>
    %cst_4 = arith.constant dense<0.000000e+00> : vector<16xf32>
    %10 = vector.multi_reduction <add>, %9, %cst_4 [1] : vector<16x32xf32> to vector<16xf32>
    %11 = vector.shape_cast %10 : vector<16xf32> to vector<16x1xf32>
    %12 = math.log %11 : vector<16x1xf32>
    %13 = arith.addf %12, %6 : vector<16x1xf32>
    %14 = tpu.iota {dimensions = array<i32: 1>} : vector<16x32xi32>
    %15 = vector.broadcast %4 : vector<16x1xi32> to vector<16x32xi32>
    %16 = arith.cmpi eq, %14, %15 : vector<16x32xi32>
    %cst_5 = arith.constant 0.000000e+00 : f32
    %17 = vector.broadcast %cst_5 : f32 to vector<16x32xf32>
    %18 = arith.select %16, %3, %17 : vector<16x32xi1>, vector<16x32xf32>
    %cst_6 = arith.constant dense<0.000000e+00> : vector<16xf32>
    %19 = vector.multi_reduction <add>, %18, %cst_6 [1] : vector<16x32xf32> to vector<16xf32>
    %20 = vector.shape_cast %19 : vector<16xf32> to vector<16x1xf32>
    %c-100_i32 = arith.constant -100 : i32
    %21 = vector.broadcast %c-100_i32 : i32 to vector<16x1xi32>
    %22 = arith.cmpi ne, %4, %21 : vector<16x1xi32>
    %23 = arith.subf %13, %20 : vector<16x1xf32>
    %cst_7 = arith.constant 0.000000e+00 : f32
    %24 = vector.broadcast %cst_7 : f32 to vector<16x1xf32>
    %25 = arith.select %22, %23, %24 : vector<16x1xi1>, vector<16x1xf32>
    %c0_8 = arith.constant 0 : index
    %c0_9 = arith.constant 0 : index
    %26 = vector.load %arg5[%c0_8, %c0_9] : memref<16x1xf32, #tpu.memory_space<vmem>>, vector<16x1xf32>
    %27 = arith.addf %26, %25 : vector<16x1xf32>
    %c0_10 = arith.constant 0 : index
    %c0_11 = arith.constant 0 : index
    %28 = vector.load %arg5[%c0_10, %c0_11] : memref<16x1xf32, #tpu.memory_space<vmem>>, vector<16x1xf32>
    tpu.vector_store %arg5[%c0_10, %c0_11], %27 {strides = array<i32>} : memref<16x1xf32, #tpu.memory_space<vmem>>, vector<16x1xf32>,
    %c0_i32_12 = arith.constant 0 : i32
    %29 = arith.cmpi eq, %arg1, %c0_i32_12 : i32
    %30 = arith.extui %29 : i1 to i32
    %c0_i32_13 = arith.constant 0 : i32
    %31 = arith.cmpi ne, %30, %c0_i32_13 : i32
    scf.if %31 {
      %c0_14 = arith.constant 0 : index
      %c0_15 = arith.constant 0 : index
      %32 = vector.load %arg5[%c0_14, %c0_15] : memref<16x1xf32, #tpu.memory_space<vmem>>, vector<16x1xf32>
      %33 = vector.shape_cast %32 : vector<16x1xf32> to vector<1x16x1xf32>
      %cst_16 = arith.constant dense<0.000000e+00> : vector<1xf32>
      %34 = vector.multi_reduction <add>, %33, %cst_16 [1, 2] : vector<1x16x1xf32> to vector<1xf32>
      %35 = vector.shape_cast %34 : vector<1xf32> to vector<1x1x1xf32>
      %36 = vector.extract %35[0, 0, 0] : f32 from vector<1x1x1xf32>
      %37 = vector.broadcast %36 : f32 to vector<1x8x128xf32>
      %c0_17 = arith.constant 0 : index
      %c0_18 = arith.constant 0 : index
      %c0_19 = arith.constant 0 : index
      %38 = vector.load %arg4[%c0_17, %c0_18, %c0_19] : memref<1x8x128xf32, #tpu.memory_space<vmem>>, vector<1x8x128xf32>
      tpu.vector_store %arg4[%c0_17, %c0_18, %c0_19], %37 {strides = array<i32>} : memref<1x8x128xf32, #tpu.memory_space<vmem>>, vector<1x8x128xf32>,
    } else {
    }
    return
  }
  func.func @transform_0(%arg0: i32, %arg1: i32) -> (i32, i32) {
    %c1_i32 = arith.constant 1 : i32
    %0 = arith.muli %arg0, %c1_i32 : i32
    %1 = arith.addi %0, %arg1 : i32
    %c0_i32 = arith.constant 0 : i32
    %2 = arith.minsi %1, %c0_i32 : i32
    %c0_i32_0 = arith.constant 0 : i32
    %c0_i32_1 = arith.constant 0 : i32
    return %2, %c0_i32_0 : i32, i32
  }
  func.func @transform_1(%arg0: i32, %arg1: i32) -> (i32, i32) {
    %c1_i32 = arith.constant 1 : i32
    %0 = arith.muli %arg0, %c1_i32 : i32
    %1 = arith.addi %0, %arg1 : i32
    %c0_i32 = arith.constant 0 : i32
    %c0_i32_0 = arith.constant 0 : i32
    return %1, %c0_i32 : i32, i32
  }
  func.func @transform_2(%arg0: i32, %arg1: i32) -> (i32, i32, i32) {
    %c0_i32 = arith.constant 0 : i32
    %c0_i32_0 = arith.constant 0 : i32
    %c0_i32_1 = arith.constant 0 : i32
    return %arg0, %c0_i32, %c0_i32_0 : i32, i32, i32
  }
}

</mosaic_0001>

<llo_original>
// kernel: vae_loss.1
$region0: #{vae_loss.1}
  #allocation0 [shape = 'u32[]', space=smem, size = 0x4, offset = 0x4, fixed_abs, tag = 'smem constant byte address 0x4 - core index']
  #allocation1 [shape = 'u32[144,128]{1,0:T(1,128)}', space=vmem, size = 0x12000, scoped, tag = 'internal scratch']
  #allocation2 [shape = 'f32[16,1]{1,0:T(8,128)}', space=vmem, size = 0x2000, scoped, tag = 'scratch operand']
  %s0 = inlined_call_operand.vmem [shape: f32[16,32], index: 0, kind: input, shape index: {}]
  %s1 = inlined_call_operand.vmem [shape: s32[16,1], index: 1, kind: input, shape index: {}]
  %s2 = inlined_call_operand.vmem [shape: f32[1,8,128], index: 2, kind: output, shape index: {}]
  %s3 = sld [smem:[#allocation0]]
  $region26: #{vae_loss.1} parent=0
    _
  %s5 = ssub.s32 1, %s3
  %s6 = scalar_select 0, %s5, %s3
  // Predicated region
  $region2: #{vae_loss.1} parent=0 // pred_check
    _
  $region3: #{vae_loss.1} parent=0 // pred_check_branch
    %8 = sbr.rel (0) target = $region5
  $region4: #{vae_loss.1} parent=0 // pred_region
    %s9 = sadd.s32 0, 0
    %p10 = scmp.lt.s32.totalorder %s9, 0
    %s11 = scalar_select %p10, %s9, 0
    %s12 = smul.u32 2, %s11
    %p13 = scmp.lt.s32.totalorder %s12, 1
    %s14 = scalar_select %p13, %s12, 1
    %s15 = smul.addr %s14, 8
    %s16 = scalar_lea.vmem %s0, %s15
    %s17 = sadd.s32 0, 0
    %p18 = scmp.lt.s32.totalorder %s17, 0
    %s19 = scalar_select %p18, %s17, 0
    %s20 = smul.u32 2, %s19
  $region5: #{vae_loss.1} parent=0 // pred_fallthru
    _
  // Predicated region
  $region6: #{vae_loss.1} parent=0 // pred_check
    _
  $region7: #{vae_loss.1} parent=0 // pred_check_branch
    %22 = sbr.rel (0) target = $region9
  $region8: #{vae_loss.1} parent=0 // pred_region
    %s23 = sadd.s32 0, 0
    %s24 = smul.u32 2, %s23
    %p25 = scmp.lt.s32.totalorder %s24, 1
    %s26 = scalar_select %p25, %s24, 1
    %s27 = smul.addr %s26, 8
    %s28 = scalar_lea.vmem %s1, %s27
    %s29 = sadd.s32 0, 0
    %s30 = smul.u32 2, %s29
  $region9: #{vae_loss.1} parent=0 // pred_fallthru
    _
  %s31 = sadd.s32 0, 0
  %p32 = scmp.lt.s32.totalorder %s31, 0
  %s33 = scalar_select %p32, %s31, 0
  %s34 = smul.u32 2, %s33
  %p35 = scmp.lt.s32.totalorder %s34, 1
  %s36 = scalar_select %p35, %s34, 1
  %s37 = smul.addr %s36, 8
  %s38 = scalar_lea.vmem %s0, %s37
  %s39 = sadd.s32 0, 0
  %s40 = smul.u32 2, %s39
  %p41 = scmp.lt.s32.totalorder %s40, 1
  %s42 = scalar_select %p41, %s40, 1
  %s43 = smul.addr %s42, 8
  %s44 = scalar_lea.vmem %s1, %s43
  %s45 = sadd.s32 0, 0
  %p46 = scmp.lt.s32.totalorder %s45, 0
  %s47 = scalar_select %p46, %s45, 0
  %s48 = smul.u32 2, %s47
  %p49 = scmp.lt.s32.totalorder %s48, 1
  %s50 = scalar_select %p49, %s48, 1
  %s51 = smul.addr %s50, 8
  %s52 = scalar_lea.vmem %s0, %s51
  %s53 = sadd.s32 0, 0
  %p54 = scmp.lt.s32.totalorder %s53, 0
  %s55 = scalar_select %p54, %s53, 0
  %s56 = smul.u32 2, %s55
  %s57 = sadd.s32 0, 0
  %s58 = smul.u32 2, %s57
  %p59 = scmp.lt.s32.totalorder %s58, 1
  %s60 = scalar_select %p59, %s58, 1
  %s61 = smul.addr %s60, 8
  %s62 = scalar_lea.vmem %s1, %s61
  %s63 = sadd.s32 0, 0
  %s64 = smul.u32 2, %s63
  %p65 = scmp.eq.s32.totalorder 0, 0
  // Predicated region
  $region10: #{vae_loss.1} parent=0 // pred_check
    %p66 = pneg %p65
  $region11: #{vae_loss.1} parent=0 // pred_check_branch
    %68 = sbr.rel (%p66) target = $region13
  $region12: #{vae_loss.1} parent=0 // pred_region
    %vm69 = vcmask 7168
    %70 = vst.msk [vmem:[#allocation2] sm:$0xff] %vm69, 0.0
    %71 = vst.msk [vmem:[#allocation2 + $0x8] sm:$0xff] %vm69, 0.0
  $region13: #{vae_loss.1} parent=0 // pred_fallthru
    _
  %v72 = vld [vmem:[%s52] sm:$0xff]
  %v73 = vld [vmem:[%s52 + $0x8] sm:$0xff]
  %v74 = vld [vmem:[%s62] sm:$0xff]
  %v75 = vld [vmem:[%s62 + $0x8] sm:$0xff]
  %vm76 = vcmask 261120
  %v77 = vsel %vm76, %v72, -inf
  %78 = vmax.xlane.f32.xlu0 %v77
  %v79 = vpop.xlane.xlu0 %78
  %v80 = vsel %vm76, %v73, -inf
  %81 = vmax.xlane.f32.xlu0 %v80
  %v82 = vpop.xlane.xlu0 %81
  %v83 = vsub.f32 %v72, %v79
  %v84 = vsub.f32 %v73, %v82
  %v85 = vmul.f32 %v83, 1.442695
  %v86 = vpow.pop %v85
  %v87 = vmul.f32 %v84, 1.442695
  %v88 = vpow.pop %v87
  %v89 = vsel %vm76, %v86, 0.0
  %90 = vadd.xlane.f32.xlu0 %v89
  %v91 = vpop.xlane.xlu0 %90
  %v92 = vsel %vm76, %v88, 0.0
  %93 = vadd.xlane.f32.xlu0 %v92
  %v94 = vpop.xlane.xlu0 %93
  %v95 = vlog2.pop %v91
  %v96 = vmul.f32 %v95, 0.6931472
  %v97 = vlog2.pop %v94
  %v98 = vmul.f32 %v97, 0.6931472
  %v99 = vadd.f32 %v96, %v79
  %v100 = vadd.f32 %v98, %v82
  %v101 = vlaneseq
  %v102 = vand.u32 %v101, 127
  %103 = vset.pattern.permute.xlu0 0
  %104 = vperm.xlu0 %103, %v74
  %v105 = vpop.permute.xlu0 %104
  %106 = vset.pattern.permute.xlu0 0
  %107 = vperm.xlu0 %106, %v75
  %v108 = vpop.permute.xlu0 %107
  %vm109 = vcmp.eq.s32.totalorder %v102, %v105
  %vm110 = vcmp.eq.s32.totalorder %v102, %v108
  %v111 = vsel %vm109, %v72, 0.0
  %v112 = vsel %vm110, %v73, 0.0
  %v113 = vsel %vm76, %v111, 0.0
  %114 = vadd.xlane.f32.xlu0 %v113
  %v115 = vpop.xlane.xlu0 %114
  %v116 = vsel %vm76, %v112, 0.0
  %117 = vadd.xlane.f32.xlu0 %v116
  %v118 = vpop.xlane.xlu0 %117
  %vm119 = vcmp.ne.s32.totalorder %v74, 4294967196
  %vm120 = vcmp.ne.s32.totalorder %v75, 4294967196
  %v121 = vsub.f32 %v99, %v115
  %v122 = vsub.f32 %v100, %v118
  %v123 = vsel %vm119, %v121, 0.0
  %v124 = vsel %vm120, %v122, 0.0
  %v125 = vld [vmem:[#allocation2] sm:$0xff]
  %v126 = vld [vmem:[#allocation2 + $0x8] sm:$0xff]
  %v127 = vadd.f32 %v125, %v123
  %v128 = vadd.f32 %v126, %v124
  %vm129 = vcmask 7168
  %130 = vst.msk [vmem:[#allocation2] sm:$0xff] %vm129, %v127
  %131 = vst.msk [vmem:[#allocation2 + $0x8] sm:$0xff] %vm129, %v128
  // Predicated region
  $region14: #{vae_loss.1} parent=0 // pred_check
    %p132 = pneg %p65
  $region15: #{vae_loss.1} parent=0 // pred_check_branch
    %134 = sbr.rel (%p132) target = $region17
  $region16: #{vae_loss.1} parent=0 // pred_region
    %v135 = vld [vmem:[#allocation2] sm:$0xff]
    %v136 = vld [vmem:[#allocation2 + $0x8] sm:$0xff]
    %v137 = vsel %vm129, %v135, 0.0
    %v138 = vsel %vm129, %v136, 0.0
    %v139 = vadd.f32 %v137, %v138
    %140 = vadd.xlane.f32.xlu0 %v139
    %v141 = vpop.xlane.xlu0 %140
    %v142 = vrot.slane %v141, 4
    %v143 = vadd.f32 %v141, %v142
    %v144 = vrot.slane %v143, 2
    %v145 = vadd.f32 %v143, %v144
    %v146 = vrot.slane %v145, 1
    %v147 = vadd.f32 %v145, %v146
    %s148 = vtos %v147
    %v149 = vstv %s148
    %150 = vst [vmem:[%s2] sm:$0xff] %v149
  $region17: #{vae_loss.1} parent=0 // pred_fallthru
    _
  // Predicated region
  $region18: #{vae_loss.1} parent=0 // pred_check
    _
  $region19: #{vae_loss.1} parent=0 // pred_check_branch
    %152 = sbr.rel (0) target = $region21
  $region20: #{vae_loss.1} parent=0 // pred_region
    _
  $region21: #{vae_loss.1} parent=0 // pred_fallthru
    _
  // Predicated region
  $region22: #{vae_loss.1} parent=0 // pred_check
    _
  $region23: #{vae_loss.1} parent=0 // pred_check_branch
    %154 = sbr.rel (0) target = $region25
  $region24: #{vae_loss.1} parent=0 // pred_region
    _
  $region25: #{vae_loss.1} parent=0 // pred_fallthru
    _

</llo_original>
